<compile_context>
chip_gen: v7x
topology: tpu7x:2x2x1
jax: 0.10.0
libtpu: 0.0.40
codegen_flags: <defaults>
</compile_context>

<pallas_src>
import jax
import jax.numpy as jnp
from jax import lax
from jax.experimental import pallas as pl
from jax.experimental.pallas import tpu as pltpu

CONTEXT_SIZE = 5
EMBEDDING_DIM = 50
HIDDEN = 128
DROPOUT_P = 0.3
_KEEP_SCALE = 1.0 / (1.0 - DROPOUT_P)
_DROP_THRESH = int(DROPOUT_P * (1 << 23))   # integer-domain threshold on 23 bits


def _round_up(x, m):
    return (x + m - 1) // m * m


def ngram_kernel(seed_ref, idx_ref, m_ref, b1_ref, w2_ref, b2_ref, out_ref):
    bt, ctx = idx_ref.shape
    k = m_ref.shape[0]                      # CONTEXT_SIZE * vp1_pad
    vp1_pad = k // ctx

    idx = idx_ref[...]                      # (bt, ctx) int32
    iota = lax.broadcasted_iota(jnp.int32, (bt, k), 1)

    # Combined one-hot over all context bands: column c*vp1_pad + idx[b, c].
    hit = iota == idx[:, 0:1]
    for c in range(1, ctx):
        hit = jnp.logical_or(hit, iota == (idx[:, c:c + 1] + c * vp1_pad))
    onehot = hit.astype(jnp.float32)        # (bt, k)

    # Fused embedding + linear1 in a single MXU matmul, bias added once.
    h = jnp.dot(onehot, m_ref[...], preferred_element_type=jnp.float32)
    h = h + b1_ref[...]
    h = jnp.maximum(h, 0.0)                 # ReLU

    # Dropout(p=0.3), train-mode semantics, deterministic hash-based mask.
    row = lax.broadcasted_iota(jnp.int32, h.shape, 0) + pl.program_id(0) * bt
    col = lax.broadcasted_iota(jnp.int32, h.shape, 1)
    x = (row * h.shape[1] + col).astype(jnp.uint32)
    x = x * jnp.uint32(0x9E3779B9) + seed_ref[0].astype(jnp.uint32)
    x = x ^ (x >> 16)
    x = x * jnp.uint32(0x85EBCA6B)
    x = x ^ (x >> 13)
    x = x * jnp.uint32(0xC2B2AE35)
    x = x ^ (x >> 16)
    keep = (x & jnp.uint32(0x7FFFFF)) >= jnp.uint32(_DROP_THRESH)
    h = h * jnp.where(keep, jnp.float32(_KEEP_SCALE), jnp.float32(0.0))

    # linear2 (tags padded to a lane-dense 128 in the wrapper; padded columns
    # carry a -1e30 bias so they vanish under the softmax).
    logits = jnp.dot(h, w2_ref[...], preferred_element_type=jnp.float32)
    logits = logits + b2_ref[...]

    # log_softmax over dim=1
    mmax = jnp.max(logits, axis=-1, keepdims=True)
    z = logits - mmax
    lse = jnp.log(jnp.sum(jnp.exp(z), axis=-1, keepdims=True))
    out_ref[...] = z - lse


def ngram_forward(inputs, emb, w1, b1, w2, b2, seed):
    """inputs: (CONTEXT_SIZE, batch) int32.  Returns (batch, tags) f32 log-probs."""
    idx = inputs.T.astype(jnp.int32)                    # == inputs.t() in PyTorch
    batch, ctx = idx.shape
    vp1, _ = emb.shape
    hidden = w1.shape[2]
    tags = w2.shape[1]

    vp1_pad = _round_up(vp1, 128)
    tags_pad = _round_up(tags, 128)

    # Precompute fused (embedding @ W1) table once per weight set:
    #   M[c*vp1_pad + v, :] = emb[v, :] @ w1[c, :, :]
    fused = jnp.einsum('ve,ceh->cvh', emb, w1)          # (ctx, vp1, hidden)
    fused = jnp.pad(fused, ((0, 0), (0, vp1_pad - vp1), (0, 0)))
    m_fused = fused.reshape(ctx * vp1_pad, hidden)

    # Lane-dense padded linear2 params.
    w2p = jnp.pad(w2, ((0, 0), (0, tags_pad - tags)))
    b2p = jnp.pad(b2.reshape(1, tags), ((0, 0), (0, tags_pad - tags)),
                  constant_values=-1e30)
    b1p = b1.reshape(1, hidden)

    # Batch grid: MXU-friendly 128-row tiles for large batches, one small
    # (multiple-of-8) tile otherwise.
    bt = 128 if batch >= 128 else _round_up(batch, 8)
    batch_pad = _round_up(batch, bt)
    # Indices assumed valid (PyTorch nn.Embedding would raise otherwise); clip
    # keeps padded / out-of-range rows inside their own context band.
    idx_p = jnp.clip(idx, 0, vp1_pad - 1)
    idx_p = jnp.pad(idx_p, ((0, batch_pad - batch), (0, 0)))

    seed_arr = jnp.asarray([seed], dtype=jnp.int32)
    k = ctx * vp1_pad

    grid_spec = pltpu.PrefetchScalarGridSpec(
        num_scalar_prefetch=1,                          # seed lives in SMEM
        grid=(batch_pad // bt,),
        in_specs=[
            pl.BlockSpec((bt, ctx), lambda i, s: (i, 0)),          # indices
            pl.BlockSpec((k, hidden), lambda i, s: (0, 0)),        # fused E@W1
            pl.BlockSpec((1, hidden), lambda i, s: (0, 0)),        # b1
            pl.BlockSpec((hidden, tags_pad), lambda i, s: (0, 0)),  # W2 (padded)
            pl.BlockSpec((1, tags_pad), lambda i, s: (0, 0)),      # b2 (padded)
        ],
        out_specs=pl.BlockSpec((bt, tags_pad), lambda i, s: (i, 0)),
    )

    out = pl.pallas_call(
        ngram_kernel,
        out_shape=jax.ShapeDtypeStruct((batch_pad, tags_pad), jnp.float32),
        grid_spec=grid_spec,
        compiler_params=pltpu.CompilerParams(
            dimension_semantics=("parallel",)),
    )(seed_arr, idx_p, m_fused, b1p, w2p, b2p)

    return out[:batch, :tags]


if __name__ == "__main__":
    vocab_size = 100
    tags_size = 10
    batch = 8

    key = jax.random.PRNGKey(0)
    k_emb, k_w1, k_b1, k_w2, k_b2, k_in = jax.random.split(key, 6)

    # Deterministic synthetic parameters (PyTorch-like init scales).
    emb = jax.random.normal(k_emb, (vocab_size + 1, EMBEDDING_DIM), jnp.float32)
    fan1 = CONTEXT_SIZE * EMBEDDING_DIM
    w1 = jax.random.uniform(k_w1, (CONTEXT_SIZE, EMBEDDING_DIM, HIDDEN),
                            jnp.float32, -1.0 / fan1 ** 0.5, 1.0 / fan1 ** 0.5)
    b1 = jax.random.uniform(k_b1, (1, HIDDEN), jnp.float32,
                            -1.0 / fan1 ** 0.5, 1.0 / fan1 ** 0.5)
    w2 = jax.random.uniform(k_w2, (HIDDEN, tags_size), jnp.float32,
                            -1.0 / HIDDEN ** 0.5, 1.0 / HIDDEN ** 0.5)
    b2 = jax.random.uniform(k_b2, (1, tags_size), jnp.float32,
                            -1.0 / HIDDEN ** 0.5, 1.0 / HIDDEN ** 0.5)

    # inputs: (CONTEXT_SIZE, batch) word indices, same layout PyTorch gets
    # before the `.t()` in forward.
    inputs = jax.random.randint(k_in, (CONTEXT_SIZE, batch), 0, vocab_size + 1,
                                dtype=jnp.int32)

    log_probs = ngram_forward(inputs, emb, w1, b1, w2, b2, seed=1234)
    log_probs = jax.block_until_ready(log_probs)

    assert log_probs.shape == (batch, tags_size)
    assert bool(jnp.all(jnp.isfinite(log_probs)))
    # each row of exp(log_probs) must sum to ~1 (log_softmax check)
    row_sums = jnp.sum(jnp.exp(log_probs), axis=1)
    assert bool(jnp.all(jnp.abs(row_sums - 1.0) < 1e-4))

    print("KERNEL_OK")
</pallas_src>

<mosaic_0001>
module attributes {stable_mosaic.version = 11 : i64} {
  func.func @ngram_kernel(%arg0: i32, %arg1: memref<1xi32, #tpu.memory_space<smem>>, %arg2: memref<8x5xi32, #tpu.memory_space<vmem>>, %arg3: memref<640x128xf32, #tpu.memory_space<vmem>>, %arg4: memref<1x128xf32, #tpu.memory_space<vmem>>, %arg5: memref<128x128xf32, #tpu.memory_space<vmem>>, %arg6: memref<1x128xf32, #tpu.memory_space<vmem>>, %arg7: memref<8x128xf32, #tpu.memory_space<vmem>>) attributes {dimension_semantics = [#tpu.dimension_semantics<parallel>], iteration_bounds = array<i64: 1>, scalar_prefetch = 1 : i64, scratch_operands = 0 : i64, tpu.core_type = #tpu.core_type<tc>, window_params = [{transform_indices = @transform_0, window_bounds = array<i64: 8, 5>}, {pipeline_mode = #tpu.pipeline_mode<synchronous>, transform_indices = @transform_1, window_bounds = array<i64: 640, 128>}, {pipeline_mode = #tpu.pipeline_mode<synchronous>, transform_indices = @transform_2, window_bounds = array<i64: 1, 128>}, {pipeline_mode = #tpu.pipeline_mode<synchronous>, transform_indices = @transform_3, window_bounds = array<i64: 128, 128>}, {pipeline_mode = #tpu.pipeline_mode<synchronous>, transform_indices = @transform_4, window_bounds = array<i64: 1, 128>}, {transform_indices = @transform_5, window_bounds = array<i64: 8, 128>}]} {
    %c0 = arith.constant 0 : index
    %c0_0 = arith.constant 0 : index
    %0 = vector.load %arg2[%c0, %c0_0] : memref<8x5xi32, #tpu.memory_space<vmem>>, vector<8x5xi32>
    %1 = tpu.iota {dimensions = array<i32: 1>} : vector<8x640xi32>
    %2 = vector.extract_strided_slice %0 {offsets = [0, 0], sizes = [8, 1], strides = [1, 1]} : vector<8x5xi32> to vector<8x1xi32>
    %3 = vector.broadcast %2 : vector<8x1xi32> to vector<8x640xi32>
    %4 = arith.cmpi eq, %1, %3 : vector<8x640xi32>
    %5 = vector.extract_strided_slice %0 {offsets = [0, 1], sizes = [8, 1], strides = [1, 1]} : vector<8x5xi32> to vector<8x1xi32>
    %c128_i32 = arith.constant 128 : i32
    %6 = vector.broadcast %c128_i32 : i32 to vector<8x1xi32>
    %7 = arith.addi %5, %6 : vector<8x1xi32>
    %8 = vector.broadcast %7 : vector<8x1xi32> to vector<8x640xi32>
    %9 = arith.cmpi eq, %1, %8 : vector<8x640xi32>
    %10 = arith.ori %4, %9 : vector<8x640xi1>
    %11 = vector.extract_strided_slice %0 {offsets = [0, 2], sizes = [8, 1], strides = [1, 1]} : vector<8x5xi32> to vector<8x1xi32>
    %c256_i32 = arith.constant 256 : i32
    %12 = vector.broadcast %c256_i32 : i32 to vector<8x1xi32>
    %13 = arith.addi %11, %12 : vector<8x1xi32>
    %14 = vector.broadcast %13 : vector<8x1xi32> to vector<8x640xi32>
    %15 = arith.cmpi eq, %1, %14 : vector<8x640xi32>
    %16 = arith.ori %10, %15 : vector<8x640xi1>
    %17 = vector.extract_strided_slice %0 {offsets = [0, 3], sizes = [8, 1], strides = [1, 1]} : vector<8x5xi32> to vector<8x1xi32>
    %c384_i32 = arith.constant 384 : i32
    %18 = vector.broadcast %c384_i32 : i32 to vector<8x1xi32>
    %19 = arith.addi %17, %18 : vector<8x1xi32>
    %20 = vector.broadcast %19 : vector<8x1xi32> to vector<8x640xi32>
    %21 = arith.cmpi eq, %1, %20 : vector<8x640xi32>
    %22 = arith.ori %16, %21 : vector<8x640xi1>
    %23 = vector.extract_strided_slice %0 {offsets = [0, 4], sizes = [8, 1], strides = [1, 1]} : vector<8x5xi32> to vector<8x1xi32>
    %c512_i32 = arith.constant 512 : i32
    %24 = vector.broadcast %c512_i32 : i32 to vector<8x1xi32>
    %25 = arith.addi %23, %24 : vector<8x1xi32>
    %26 = vector.broadcast %25 : vector<8x1xi32> to vector<8x640xi32>
    %27 = arith.cmpi eq, %1, %26 : vector<8x640xi32>
    %28 = arith.ori %22, %27 : vector<8x640xi1>
    %29 = arith.extui %28 : vector<8x640xi1> to vector<8x640xi32>
    %30 = arith.sitofp %29 : vector<8x640xi32> to vector<8x640xf32>
    %c0_1 = arith.constant 0 : index
    %c0_2 = arith.constant 0 : index
    %31 = vector.load %arg3[%c0_1, %c0_2] : memref<640x128xf32, #tpu.memory_space<vmem>>, vector<640x128xf32>
    %cst = arith.constant dense<0.000000e+00> : vector<8x128xf32>
    %32 = tpu.matmul %30, %31, %cst {dimension_numbers = #tpu.dot_dimension_numbers<[1], [0], [0], [1], [0, 0, 1, 1], [], []>} : vector<8x640xf32>, vector<640x128xf32>, vector<8x128xf32> -> vector<8x128xf32>
    %c0_3 = arith.constant 0 : index
    %c0_4 = arith.constant 0 : index
    %33 = vector.load %arg4[%c0_3, %c0_4] : memref<1x128xf32, #tpu.memory_space<vmem>>, vector<1x128xf32>
    %34 = vector.broadcast %33 : vector<1x128xf32> to vector<8x128xf32>
    %35 = arith.addf %32, %34 : vector<8x128xf32>
    %cst_5 = arith.constant 0.000000e+00 : f32
    %36 = vector.broadcast %cst_5 : f32 to vector<8x128xf32>
    %37 = arith.maximumf %35, %36 : vector<8x128xf32>
    %38 = tpu.iota {dimensions = array<i32: 0>} : vector<8x128xi32>
    %c8_i32 = arith.constant 8 : i32
    %39 = arith.muli %arg0, %c8_i32 : i32
    %40 = vector.broadcast %39 : i32 to vector<8x128xi32>
    %41 = arith.addi %38, %40 : vector<8x128xi32>
    %42 = tpu.iota {dimensions = array<i32: 1>} : vector<8x128xi32>
    %c128_i32_6 = arith.constant 128 : i32
    %43 = vector.broadcast %c128_i32_6 : i32 to vector<8x128xi32>
    %44 = arith.muli %41, %43 : vector<8x128xi32>
    %45 = arith.addi %44, %42 : vector<8x128xi32>
    %c-1640531527_i32 = arith.constant -1640531527 : i32
    %46 = vector.broadcast %c-1640531527_i32 : i32 to vector<8x128xi32>
    %47 = arith.muli %45, %46 : vector<8x128xi32>
    %c0_7 = arith.constant 0 : index
    %48 = memref.load %arg1[%c0_7] : memref<1xi32, #tpu.memory_space<smem>>
    %49 = vector.broadcast %48 : i32 to vector<8x128xi32>
    %50 = arith.addi %47, %49 : vector<8x128xi32>
    %c16_i32 = arith.constant 16 : i32
    %51 = vector.broadcast %c16_i32 : i32 to vector<8x128xi32>
    %52 = arith.shrui %50, %51 : vector<8x128xi32>
    %53 = arith.xori %50, %52 : vector<8x128xi32>
    %c-2048144789_i32 = arith.constant -2048144789 : i32
    %54 = vector.broadcast %c-2048144789_i32 : i32 to vector<8x128xi32>
    %55 = arith.muli %53, %54 : vector<8x128xi32>
    %c13_i32 = arith.constant 13 : i32
    %56 = vector.broadcast %c13_i32 : i32 to vector<8x128xi32>
    %57 = arith.shrui %55, %56 : vector<8x128xi32>
    %58 = arith.xori %55, %57 : vector<8x128xi32>
    %c-1028477387_i32 = arith.constant -1028477387 : i32
    %59 = vector.broadcast %c-1028477387_i32 : i32 to vector<8x128xi32>
    %60 = arith.muli %58, %59 : vector<8x128xi32>
    %c16_i32_8 = arith.constant 16 : i32
    %61 = vector.broadcast %c16_i32_8 : i32 to vector<8x128xi32>
    %62 = arith.shrui %60, %61 : vector<8x128xi32>
    %63 = arith.xori %60, %62 : vector<8x128xi32>
    %c8388607_i32 = arith.constant 8388607 : i32
    %64 = vector.broadcast %c8388607_i32 : i32 to vector<8x128xi32>
    %65 = arith.andi %63, %64 : vector<8x128xi32>
    %c2516582_i32 = arith.constant 2516582 : i32
    %66 = vector.broadcast %c2516582_i32 : i32 to vector<8x128xi32>
    %67 = arith.cmpi uge, %65, %66 : vector<8x128xi32>
    %cst_9 = arith.constant 1.42857146 : f32
    %cst_10 = arith.constant 0.000000e+00 : f32
    %68 = vector.broadcast %cst_9 : f32 to vector<8x128xf32>
    %69 = vector.broadcast %cst_10 : f32 to vector<8x128xf32>
    %70 = arith.select %67, %68, %69 : vector<8x128xi1>, vector<8x128xf32>
    %71 = arith.mulf %37, %70 : vector<8x128xf32>
    %c0_11 = arith.constant 0 : index
    %c0_12 = arith.constant 0 : index
    %72 = vector.load %arg5[%c0_11, %c0_12] : memref<128x128xf32, #tpu.memory_space<vmem>>, vector<128x128xf32>
    %cst_13 = arith.constant dense<0.000000e+00> : vector<8x128xf32>
    %73 = tpu.matmul %71, %72, %cst_13 {dimension_numbers = #tpu.dot_dimension_numbers<[1], [0], [0], [1], [0, 0, 1, 1], [], []>} : vector<8x128xf32>, vector<128x128xf32>, vector<8x128xf32> -> vector<8x128xf32>
    %c0_14 = arith.constant 0 : index
    %c0_15 = arith.constant 0 : index
    %74 = vector.load %arg6[%c0_14, %c0_15] : memref<1x128xf32, #tpu.memory_space<vmem>>, vector<1x128xf32>
    %75 = vector.broadcast %74 : vector<1x128xf32> to vector<8x128xf32>
    %76 = arith.addf %73, %75 : vector<8x128xf32>
    %cst_16 = arith.constant dense<0xFF800000> : vector<8xf32>
    %77 = vector.multi_reduction <maximumf>, %76, %cst_16 [1] : vector<8x128xf32> to vector<8xf32>
    %78 = vector.shape_cast %77 : vector<8xf32> to vector<8x1xf32>
    %79 = vector.broadcast %78 : vector<8x1xf32> to vector<8x128xf32>
    %80 = arith.subf %76, %79 : vector<8x128xf32>
    %81 = math.exp %80 : vector<8x128xf32>
    %cst_17 = arith.constant dense<0.000000e+00> : vector<8xf32>
    %82 = vector.multi_reduction <add>, %81, %cst_17 [1] : vector<8x128xf32> to vector<8xf32>
    %83 = vector.shape_cast %82 : vector<8xf32> to vector<8x1xf32>
    %84 = math.log %83 : vector<8x1xf32>
    %85 = vector.broadcast %84 : vector<8x1xf32> to vector<8x128xf32>
    %86 = arith.subf %80, %85 : vector<8x128xf32>
    %c0_18 = arith.constant 0 : index
    %c0_19 = arith.constant 0 : index
    %87 = vector.load %arg7[%c0_18, %c0_19] : memref<8x128xf32, #tpu.memory_space<vmem>>, vector<8x128xf32>
    tpu.vector_store %arg7[%c0_18, %c0_19], %86 {strides = array<i32>} : memref<8x128xf32, #tpu.memory_space<vmem>>, vector<8x128xf32>,
    return
  }
  func.func @transform_0(%arg0: i32, %arg1: memref<1xi32, #tpu.memory_space<smem>>) -> (i32, i32) {
    %c0_i32 = arith.constant 0 : i32
    %c0_i32_0 = arith.constant 0 : i32
    return %arg0, %c0_i32 : i32, i32
  }
  func.func @transform_1(%arg0: i32, %arg1: memref<1xi32, #tpu.memory_space<smem>>) -> (i32, i32) {
    %c0_i32 = arith.constant 0 : i32
    %c0_i32_0 = arith.constant 0 : i32
    %c0_i32_1 = arith.constant 0 : i32
    return %c0_i32, %c0_i32_0 : i32, i32
  }
  func.func @transform_2(%arg0: i32, %arg1: memref<1xi32, #tpu.memory_space<smem>>) -> (i32, i32) {
    %c0_i32 = arith.constant 0 : i32
    %c0_i32_0 = arith.constant 0 : i32
    %c0_i32_1 = arith.constant 0 : i32
    return %c0_i32, %c0_i32_0 : i32, i32
  }
  func.func @transform_3(%arg0: i32, %arg1: memref<1xi32, #tpu.memory_space<smem>>) -> (i32, i32) {
    %c0_i32 = arith.constant 0 : i32
    %c0_i32_0 = arith.constant 0 : i32
    %c0_i32_1 = arith.constant 0 : i32
    return %c0_i32, %c0_i32_0 : i32, i32
  }
  func.func @transform_4(%arg0: i32, %arg1: memref<1xi32, #tpu.memory_space<smem>>) -> (i32, i32) {
    %c0_i32 = arith.constant 0 : i32
    %c0_i32_0 = arith.constant 0 : i32
    %c0_i32_1 = arith.constant 0 : i32
    return %c0_i32, %c0_i32_0 : i32, i32
  }
  func.func @transform_5(%arg0: i32, %arg1: memref<1xi32, #tpu.memory_space<smem>>) -> (i32, i32) {
    %c0_i32 = arith.constant 0 : i32
    %c0_i32_0 = arith.constant 0 : i32
    return %arg0, %c0_i32 : i32, i32
  }
}

</mosaic_0001>

<llo_original>
// kernel: tpu_custom_call.1
$region0: #{tpu_custom_call.1}
  #allocation0 [shape = 'u32[]', space=smem, size = 0x4, offset = 0x4, fixed_abs, tag = 'smem constant byte address 0x4 - core index']
  #allocation1 [shape = 'u32[144,128]{1,0:T(1,128)}', space=vmem, size = 0x12000, scoped, tag = 'internal scratch']
  #allocation2 [shape = 's32[1]{0}', space=sflag, size = 0x4, scoped, tag = 'scoped memory for tpu_custom_call.1']
  #allocation3 [shape = 's32[1]{0:T(128)S(6)}', space=smem, size = 0x200, scoped, tag = 'prefetched SMEM operand 0']
  %s0 = inlined_call_operand.<no memory space> [shape: s32[1], index: 0, kind: input, shape index: {}]
  %s1 = inlined_call_operand.hbm [shape: s32[8,5], index: 1, kind: input, shape index: {}]
  %s2 = inlined_call_operand.hbm [shape: f32[640,128], index: 2, kind: input, shape index: {}]
  %s3 = inlined_call_operand.vmem [shape: f32[1,128], index: 3, kind: input, shape index: {}]
  %s4 = inlined_call_operand.hbm [shape: f32[128,128], index: 4, kind: input, shape index: {}]
  %s5 = inlined_call_operand.vmem [shape: f32[1,128], index: 5, kind: input, shape index: {}]
  %s6 = inlined_call_operand.hbm [shape: f32[8,128], index: 6, kind: output, shape index: {}]
  %s7 = sld [smem:[#allocation0]]
  $region42: #{tpu_custom_call.1} parent=0
    _
  %s9 = ssub.s32 1, %s7
  %s10 = scalar_select 0, %s9, %s7
  %11 = sst [smem:[#allocation3]] %s0
  $region1: #{tpu_custom_call.1} parent=0
    #allocation4 [shape = 'u8[4096]{0}', space=vmem, size = 0x1000, scoped, tag = 'input window, operand 1, single buffered']
    #allocation5 [shape = 's32[1]{0}', space=sflag, size = 0x4, scoped, tag = 'scoped memory for tpu_custom_call.1']
    #allocation6 [shape = 's32[1]{0}', space=sflag, size = 0x4, scoped, tag = 'scoped memory for tpu_custom_call.1']
    #allocation7 [shape = 'u8[327680]{0}', space=vmem, size = 0x50000, scoped, tag = 'input window, operand 2, single buffered']
    #allocation8 [shape = 's32[1]{0}', space=sflag, size = 0x4, scoped, tag = 'scoped memory for tpu_custom_call.1']
    #allocation9 [shape = 'u8[65536]{0}', space=vmem, size = 0x10000, scoped, tag = 'input window, operand 4, single buffered']
    #allocation10 [shape = 'u8[4096]{0}', space=vmem, size = 0x1000, scoped, tag = 'output window, operand 0, single buffered']
    %12 = vsyncpa [#allocation5], 0
    %13 = vsyncpa [#allocation8], 0
    %14 = vsyncpa [#allocation6], 0
    // Predicated region
    $region2: #{tpu_custom_call.1} parent=1 // pred_check
      _
    $region3: #{tpu_custom_call.1} parent=1 // pred_check_branch
      %16 = sbr.rel (0) target = $region5
    $region4: #{tpu_custom_call.1} parent=1 // pred_region
      %s18 = ssub.s32 128, 128
      %19 = vsyncadd [#allocation5], %s18
      %s21 = sshll.u32 [#allocation4], 4
      %s22 = int_to_ptr.vmem [resolvable:$true] %s21
      %24 = dma.hbm_to_vmem [thread:$0]  %s1, 128, %s22, [#allocation5]
    $region5: #{tpu_custom_call.1} parent=1 // pred_fallthru
      _
    // Predicated region
    $region6: #{tpu_custom_call.1} parent=1 // pred_check
      _
    $region7: #{tpu_custom_call.1} parent=1 // pred_check_branch
      %26 = sbr.rel (0) target = $region9
    $region8: #{tpu_custom_call.1} parent=1 // pred_region
      %s28 = ssub.s32 10240, 10240
      %29 = vsyncadd [#allocation8], %s28
      %s30 = sshll.u32 [#allocation7], 4
      %s31 = int_to_ptr.vmem [resolvable:$true] %s30
      %36 = dma.hbm_to_vmem [thread:$0]  %s2, 10240, %s31, [#allocation8], 128, 128, 8
    $region9: #{tpu_custom_call.1} parent=1 // pred_fallthru
      _
    // Predicated region
    $region10: #{tpu_custom_call.1} parent=1 // pred_check
      _
    $region11: #{tpu_custom_call.1} parent=1 // pred_check_branch
      %38 = sbr.rel (0) target = $region13
    $region12: #{tpu_custom_call.1} parent=1 // pred_region
      _
    $region13: #{tpu_custom_call.1} parent=1 // pred_fallthru
      _
    // Predicated region
    $region14: #{tpu_custom_call.1} parent=1 // pred_check
      _
    $region15: #{tpu_custom_call.1} parent=1 // pred_check_branch
      %40 = sbr.rel (0) target = $region17
    $region16: #{tpu_custom_call.1} parent=1 // pred_region
      %s42 = ssub.s32 2048, 2048
      %43 = vsyncadd [#allocation8], %s42
      %s44 = sshll.u32 [#allocation9], 4
      %s45 = int_to_ptr.vmem [resolvable:$true] %s44
      %50 = dma.hbm_to_vmem [thread:$0]  %s4, 2048, %s45, [#allocation8], 128, 128, 8
    $region17: #{tpu_custom_call.1} parent=1 // pred_fallthru
      _
    // Predicated region
    $region18: #{tpu_custom_call.1} parent=1 // pred_check
      _
    $region19: #{tpu_custom_call.1} parent=1 // pred_check_branch
      %52 = sbr.rel (0) target = $region21
    $region20: #{tpu_custom_call.1} parent=1 // pred_region
      _
    $region21: #{tpu_custom_call.1} parent=1 // pred_fallthru
      _
    // Predicated region
    $region22: #{tpu_custom_call.1} parent=1 // pred_check
      _
    $region23: #{tpu_custom_call.1} parent=1 // pred_check_branch
      %54 = sbr.rel (0) target = $region25
    $region24: #{tpu_custom_call.1} parent=1 // pred_region
      %55 = dma.done [#allocation5], 128
    $region25: #{tpu_custom_call.1} parent=1 // pred_fallthru
      _
    // Predicated region
    $region26: #{tpu_custom_call.1} parent=1 // pred_check
      _
    $region27: #{tpu_custom_call.1} parent=1 // pred_check_branch
      %57 = sbr.rel (0) target = $region29
    $region28: #{tpu_custom_call.1} parent=1 // pred_region
      %58 = dma.done [#allocation8], 10240
    $region29: #{tpu_custom_call.1} parent=1 // pred_fallthru
      _
    // Predicated region
    $region30: #{tpu_custom_call.1} parent=1 // pred_check
      _
    $region31: #{tpu_custom_call.1} parent=1 // pred_check_branch
      %60 = sbr.rel (0) target = $region33
    $region32: #{tpu_custom_call.1} parent=1 // pred_region
      %61 = dma.done [#allocation8], 2048
    $region33: #{tpu_custom_call.1} parent=1 // pred_fallthru
      _
    %v62 = vld [vmem:[#allocation4] sm:$0xff]
    %v63 = vlaneseq
    %v64 = vand.u32 %v63, 127
    %v65 = vadd.s32 %v64, 128
    %v66 = vadd.s32 %v64, 256
    %v67 = vadd.s32 %v64, 384
    %v68 = vadd.s32 %v64, 512
    %69 = vset.pattern.permute.xlu0 0
    %70 = vperm.xlu0 %69, %v62
    %v71 = vpop.permute.xlu0 %70
    %vm72 = vcmp.eq.s32.totalorder %v64, %v71
    %vm73 = vcmp.eq.s32.totalorder %v65, %v71
    %vm74 = vcmp.eq.s32.totalorder %v66, %v71
    %vm75 = vcmp.eq.s32.totalorder %v67, %v71
    %vm76 = vcmp.eq.s32.totalorder %v68, %v71
    %v77 = vadd.s32 %v62, 128
    %78 = vset.pattern.permute.xlu0 1
    %79 = vperm.xlu0 %78, %v77
    %v80 = vpop.permute.xlu0 %79
    %vm81 = vcmp.eq.s32.totalorder %v64, %v80
    %vm82 = vcmp.eq.s32.totalorder %v65, %v80
    %vm83 = vcmp.eq.s32.totalorder %v66, %v80
    %vm84 = vcmp.eq.s32.totalorder %v67, %v80
    %vm85 = vcmp.eq.s32.totalorder %v68, %v80
    %vm86 = vmor %vm72, %vm81
    %vm87 = vmor %vm73, %vm82
    %vm88 = vmor %vm74, %vm83
    %vm89 = vmor %vm75, %vm84
    %vm90 = vmor %vm76, %vm85
    %v91 = vadd.s32 %v62, 256
    %92 = vset.pattern.permute.xlu0 2
    %93 = vperm.xlu0 %92, %v91
    %v94 = vpop.permute.xlu0 %93
    %vm95 = vcmp.eq.s32.totalorder %v64, %v94
    %vm96 = vcmp.eq.s32.totalorder %v65, %v94
    %vm97 = vcmp.eq.s32.totalorder %v66, %v94
    %vm98 = vcmp.eq.s32.totalorder %v67, %v94
    %vm99 = vcmp.eq.s32.totalorder %v68, %v94
    %vm100 = vmor %vm86, %vm95
    %vm101 = vmor %vm87, %vm96
    %vm102 = vmor %vm88, %vm97
    %vm103 = vmor %vm89, %vm98
    %vm104 = vmor %vm90, %vm99
    %v105 = vadd.s32 %v62, 384
    %106 = vset.pattern.permute.xlu0 3
    %107 = vperm.xlu0 %106, %v105
    %v108 = vpop.permute.xlu0 %107
    %vm109 = vcmp.eq.s32.totalorder %v64, %v108
    %vm110 = vcmp.eq.s32.totalorder %v65, %v108
    %vm111 = vcmp.eq.s32.totalorder %v66, %v108
    %vm112 = vcmp.eq.s32.totalorder %v67, %v108
    %vm113 = vcmp.eq.s32.totalorder %v68, %v108
    %vm114 = vmor %vm100, %vm109
    %vm115 = vmor %vm101, %vm110
    %vm116 = vmor %vm102, %vm111
    %vm117 = vmor %vm103, %vm112
    %vm118 = vmor %vm104, %vm113
    %v119 = vadd.s32 %v62, 512
    %120 = vset.pattern.permute.xlu0 4
    %121 = vperm.xlu0 %120, %v119
    %v122 = vpop.permute.xlu0 %121
    %vm123 = vcmp.eq.s32.totalorder %v64, %v122
    %vm124 = vcmp.eq.s32.totalorder %v65, %v122
    %vm125 = vcmp.eq.s32.totalorder %v66, %v122
    %vm126 = vcmp.eq.s32.totalorder %v67, %v122
    %vm127 = vcmp.eq.s32.totalorder %v68, %v122
    %vm128 = vmor %vm114, %vm123
    %vm129 = vmor %vm115, %vm124
    %vm130 = vmor %vm116, %vm125
    %vm131 = vmor %vm117, %vm126
    %vm132 = vmor %vm118, %vm127
    %v133 = vsel %vm128, 1, 0
    %v134 = vsel %vm129, 1, 0
    %v135 = vsel %vm130, 1, 0
    %v136 = vsel %vm131, 1, 0
    %v137 = vsel %vm132, 1, 0
    %v138 = vcvt.s32.f32 %v133
    %v139 = vcvt.s32.f32 %v134
    %v140 = vcvt.s32.f32 %v135
    %v141 = vcvt.s32.f32 %v136
    %v142 = vcvt.s32.f32 %v137
    %v143 = vld [vmem:[#allocation7] sm:$0xff]
    %v144 = vld [vmem:[#allocation7 + $0x8] sm:$0xff]
    %v145 = vld [vmem:[#allocation7 + $0x10] sm:$0xff]
    %v146 = vld [vmem:[#allocation7 + $0x18] sm:$0xff]
    %v147 = vld [vmem:[#allocation7 + $0x20] sm:$0xff]
    %v148 = vld [vmem:[#allocation7 + $0x28] sm:$0xff]
    %v149 = vld [vmem:[#allocation7 + $0x30] sm:$0xff]
    %v150 = vld [vmem:[#allocation7 + $0x38] sm:$0xff]
    %v151 = vld [vmem:[#allocation7 + $0x40] sm:$0xff]
    %v152 = vld [vmem:[#allocation7 + $0x48] sm:$0xff]
    %v153 = vld [vmem:[#allocation7 + $0x50] sm:$0xff]
    %v154 = vld [vmem:[#allocation7 + $0x58] sm:$0xff]
    %v155 = vld [vmem:[#allocation7 + $0x60] sm:$0xff]
    %v156 = vld [vmem:[#allocation7 + $0x68] sm:$0xff]
    %v157 = vld [vmem:[#allocation7 + $0x70] sm:$0xff]
    %v158 = vld [vmem:[#allocation7 + $0x78] sm:$0xff]
    %v159 = vld [vmem:[#allocation7 + $0x80] sm:$0xff]
    %v160 = vld [vmem:[#allocation7 + $0x88] sm:$0xff]
    %v161 = vld [vmem:[#allocation7 + $0x90] sm:$0xff]
    %v162 = vld [vmem:[#allocation7 + $0x98] sm:$0xff]
    %v163 = vld [vmem:[#allocation7 + $0xa0] sm:$0xff]
    %v164 = vld [vmem:[#allocation7 + $0xa8] sm:$0xff]
    %v165 = vld [vmem:[#allocation7 + $0xb0] sm:$0xff]
    %v166 = vld [vmem:[#allocation7 + $0xb8] sm:$0xff]
    %v167 = vld [vmem:[#allocation7 + $0xc0] sm:$0xff]
    %v168 = vld [vmem:[#allocation7 + $0xc8] sm:$0xff]
    %v169 = vld [vmem:[#allocation7 + $0xd0] sm:$0xff]
    %v170 = vld [vmem:[#allocation7 + $0xd8] sm:$0xff]
    %v171 = vld [vmem:[#allocation7 + $0xe0] sm:$0xff]
    %v172 = vld [vmem:[#allocation7 + $0xe8] sm:$0xff]
    %v173 = vld [vmem:[#allocation7 + $0xf0] sm:$0xff]
    %v174 = vld [vmem:[#allocation7 + $0xf8] sm:$0xff]
    %v175 = vld [vmem:[#allocation7 + $0x100] sm:$0xff]
    %v176 = vld [vmem:[#allocation7 + $0x108] sm:$0xff]
    %v177 = vld [vmem:[#allocation7 + $0x110] sm:$0xff]
    %v178 = vld [vmem:[#allocation7 + $0x118] sm:$0xff]
    %v179 = vld [vmem:[#allocation7 + $0x120] sm:$0xff]
    %v180 = vld [vmem:[#allocation7 + $0x128] sm:$0xff]
    %v181 = vld [vmem:[#allocation7 + $0x130] sm:$0xff]
    %v182 = vld [vmem:[#allocation7 + $0x138] sm:$0xff]
    %v183 = vld [vmem:[#allocation7 + $0x140] sm:$0xff]
    %v184 = vld [vmem:[#allocation7 + $0x148] sm:$0xff]
    %v185 = vld [vmem:[#allocation7 + $0x150] sm:$0xff]
    %v186 = vld [vmem:[#allocation7 + $0x158] sm:$0xff]
    %v187 = vld [vmem:[#allocation7 + $0x160] sm:$0xff]
    %v188 = vld [vmem:[#allocation7 + $0x168] sm:$0xff]
    %v189 = vld [vmem:[#allocation7 + $0x170] sm:$0xff]
    %v190 = vld [vmem:[#allocation7 + $0x178] sm:$0xff]
    %v191 = vld [vmem:[#allocation7 + $0x180] sm:$0xff]
    %v192 = vld [vmem:[#allocation7 + $0x188] sm:$0xff]
    %v193 = vld [vmem:[#allocation7 + $0x190] sm:$0xff]
    %v194 = vld [vmem:[#allocation7 + $0x198] sm:$0xff]
    %v195 = vld [vmem:[#allocation7 + $0x1a0] sm:$0xff]
    %v196 = vld [vmem:[#allocation7 + $0x1a8] sm:$0xff]
    %v197 = vld [vmem:[#allocation7 + $0x1b0] sm:$0xff]
    %v198 = vld [vmem:[#allocation7 + $0x1b8] sm:$0xff]
    %v199 = vld [vmem:[#allocation7 + $0x1c0] sm:$0xff]
    %v200 = vld [vmem:[#allocation7 + $0x1c8] sm:$0xff]
    %v201 = vld [vmem:[#allocation7 + $0x1d0] sm:$0xff]
    %v202 = vld [vmem:[#allocation7 + $0x1d8] sm:$0xff]
    %v203 = vld [vmem:[#allocation7 + $0x1e0] sm:$0xff]
    %v204 = vld [vmem:[#allocation7 + $0x1e8] sm:$0xff]
    %v205 = vld [vmem:[#allocation7 + $0x1f0] sm:$0xff]
    %v206 = vld [vmem:[#allocation7 + $0x1f8] sm:$0xff]
    %v207 = vld [vmem:[#allocation7 + $0x200] sm:$0xff]
    %v208 = vld [vmem:[#allocation7 + $0x208] sm:$0xff]
    %v209 = vld [vmem:[#allocation7 + $0x210] sm:$0xff]
    %v210 = vld [vmem:[#allocation7 + $0x218] sm:$0xff]
    %v211 = vld [vmem:[#allocation7 + $0x220] sm:$0xff]
    %v212 = vld [vmem:[#allocation7 + $0x228] sm:$0xff]
    %v213 = vld [vmem:[#allocation7 + $0x230] sm:$0xff]
    %v214 = vld [vmem:[#allocation7 + $0x238] sm:$0xff]
    %v215 = vld [vmem:[#allocation7 + $0x240] sm:$0xff]
    %v216 = vld [vmem:[#allocation7 + $0x248] sm:$0xff]
    %v217 = vld [vmem:[#allocation7 + $0x250] sm:$0xff]
    %v218 = vld [vmem:[#allocation7 + $0x258] sm:$0xff]
    %v219 = vld [vmem:[#allocation7 + $0x260] sm:$0xff]
    %v220 = vld [vmem:[#allocation7 + $0x268] sm:$0xff]
    %v221 = vld [vmem:[#allocation7 + $0x270] sm:$0xff]
    %v222 = vld [vmem:[#allocation7 + $0x278] sm:$0xff]
    %v223 = vld [vmem:[%s3] sm:$0x1]
    %v225 = vlaneseq
    %v226 = vshrl.u32 %v225, 7
    %v227 = vsub.s32 0, %v226
    %v228 = vrot.slane %v223, %v227
    %230 = vmatprep.subr.mxu0 0.0
    %231 = vmatpush1.msra.mxu0 %v143
    %232 = vmatprep.subr.mxu0 0.0
    %233 = vmatpush1.msra.mxu0 %v144
    %234 = vmatprep.subr.mxu0 0.0
    %235 = vmatpush1.msra.mxu0 %v145
    %236 = vmatprep.subr.mxu0 0.0
    %237 = vmatpush1.msra.mxu0 %v146
    %238 = vmatprep.subr.mxu0 0.0
    %239 = vmatpush1.msra.mxu0 %v147
    %240 = vmatprep.subr.mxu0 0.0
    %241 = vmatpush1.msra.mxu0 %v148
    %242 = vmatprep.subr.mxu0 0.0
    %243 = vmatpush1.msra.mxu0 %v149
    %244 = vmatprep.subr.mxu0 0.0
    %245 = vmatpush1.msra.mxu0 %v150
    %246 = vmatprep.subr.mxu0 0.0
    %247 = vmatpush1.msra.mxu0 %v151
    %248 = vmatprep.subr.mxu0 0.0
    %249 = vmatpush1.msra.mxu0 %v152
    %250 = vmatprep.subr.mxu0 0.0
    %251 = vmatpush1.msra.mxu0 %v153
    %252 = vmatprep.subr.mxu0 0.0
    %253 = vmatpush1.msra.mxu0 %v154
    %254 = vmatprep.subr.mxu0 0.0
    %255 = vmatpush1.msra.mxu0 %v155
    %256 = vmatprep.subr.mxu0 0.0
    %257 = vmatpush1.msra.mxu0 %v156
    %258 = vmatprep.subr.mxu0 0.0
    %259 = vmatpush1.msra.mxu0 %v157
    %260 = vmatprep.subr.mxu0 0.0
    %261 = vmatpush1.msra.mxu0 %v158
    %262 = vmatprep.subr.mxu0 0.0
    %263 = vmatpush1.msra.mxu0 %v159
    %264 = vmatprep.subr.mxu0 0.0
    %265 = vmatpush1.msra.mxu0 %v160
    %266 = vmatprep.subr.mxu0 0.0
    %267 = vmatpush1.msra.mxu0 %v161
    %268 = vmatprep.subr.mxu0 0.0
    %269 = vmatpush1.msra.mxu0 %v162
    %270 = vmatprep.subr.mxu0 0.0
    %271 = vmatpush1.msra.mxu0 %v163
    %272 = vmatprep.subr.mxu0 0.0
    %273 = vmatpush1.msra.mxu0 %v164
    %274 = vmatprep.subr.mxu0 0.0
    %275 = vmatpush1.msra.mxu0 %v165
    %276 = vmatprep.subr.mxu0 0.0
    %277 = vmatpush1.msra.mxu0 %v166
    %278 = vmatprep.subr.mxu0 0.0
    %279 = vmatpush1.msra.mxu0 %v167
    %280 = vmatprep.subr.mxu0 0.0
    %281 = vmatpush1.msra.mxu0 %v168
    %282 = vmatprep.subr.mxu0 0.0
    %283 = vmatpush1.msra.mxu0 %v169
    %284 = vmatprep.subr.mxu0 0.0
    %285 = vmatpush1.msra.mxu0 %v170
    %286 = vmatprep.subr.mxu0 0.0
    %287 = vmatpush1.msra.mxu0 %v171
    %288 = vmatprep.subr.mxu0 0.0
    %289 = vmatpush1.msra.mxu0 %v172
    %290 = vmatprep.subr.mxu0 0.0
    %291 = vmatpush1.msra.mxu0 %v173
    %292 = vmatprep.subr.mxu0 0.0
    %293 = vmatpush1.msra.mxu0 %v174
    %294 = vmatprep.mubr.f32.mxu0 %v139
    %295 = vmatmul.mubr.f32.gmra.mrb[0].mxu0 %v138
    %v296 = vpop.f32.mrb[0].mxu0
    %v297 = vadd.f32 %v228, %v296
    %v298 = vpop.f32.mrb[0].mxu0
    %299 = vdwg.mxu0
    %300 = vmatprep.subr.mxu0 0.0
    %301 = vmatpush1.msra.mxu0 %v175
    %302 = vmatprep.subr.mxu0 0.0
    %303 = vmatpush1.msra.mxu0 %v176
    %304 = vmatprep.subr.mxu0 0.0
    %305 = vmatpush1.msra.mxu0 %v177
    %306 = vmatprep.subr.mxu0 0.0
    %307 = vmatpush1.msra.mxu0 %v178
    %308 = vmatprep.subr.mxu0 0.0
    %309 = vmatpush1.msra.mxu0 %v179
    %310 = vmatprep.subr.mxu0 0.0
    %311 = vmatpush1.msra.mxu0 %v180
    %312 = vmatprep.subr.mxu0 0.0
    %313 = vmatpush1.msra.mxu0 %v181
    %314 = vmatprep.subr.mxu0 0.0
    %315 = vmatpush1.msra.mxu0 %v182
    %316 = vmatprep.subr.mxu0 0.0
    %317 = vmatpush1.msra.mxu0 %v183
    %318 = vmatprep.subr.mxu0 0.0
    %319 = vmatpush1.msra.mxu0 %v184
    %320 = vmatprep.subr.mxu0 0.0
    %321 = vmatpush1.msra.mxu0 %v185
    %322 = vmatprep.subr.mxu0 0.0
    %323 = vmatpush1.msra.mxu0 %v186
    %324 = vmatprep.subr.mxu0 0.0
    %325 = vmatpush1.msra.mxu0 %v187
    %326 = vmatprep.subr.mxu0 0.0
    %327 = vmatpush1.msra.mxu0 %v188
    %328 = vmatprep.subr.mxu0 0.0
    %329 = vmatpush1.msra.mxu0 %v189
    %330 = vmatprep.subr.mxu0 0.0
    %331 = vmatpush1.msra.mxu0 %v190
    %332 = vmatprep.subr.mxu0 0.0
    %333 = vmatpush1.msra.mxu0 %v191
    %334 = vmatprep.subr.mxu0 0.0
    %335 = vmatpush1.msra.mxu0 %v192
    %336 = vmatprep.subr.mxu0 0.0
    %337 = vmatpush1.msra.mxu0 %v193
    %338 = vmatprep.subr.mxu0 0.0
    %339 = vmatpush1.msra.mxu0 %v194
    %340 = vmatprep.subr.mxu0 0.0
    %341 = vmatpush1.msra.mxu0 %v195
    %342 = vmatprep.subr.mxu0 0.0
    %343 = vmatpush1.msra.mxu0 %v196
    %344 = vmatprep.subr.mxu0 0.0
    %345 = vmatpush1.msra.mxu0 %v197
    %346 = vmatprep.subr.mxu0 0.0
    %347 = vmatpush1.msra.mxu0 %v198
    %348 = vmatprep.subr.mxu0 0.0
    %349 = vmatpush1.msra.mxu0 %v199
    %350 = vmatprep.subr.mxu0 0.0
    %351 = vmatpush1.msra.mxu0 %v200
    %352 = vmatprep.subr.mxu0 0.0
    %353 = vmatpush1.msra.mxu0 %v201
    %354 = vmatprep.subr.mxu0 0.0
    %355 = vmatpush1.msra.mxu0 %v202
    %356 = vmatprep.subr.mxu0 0.0
    %357 = vmatpush1.msra.mxu0 %v203
    %358 = vmatprep.subr.mxu0 0.0
    %359 = vmatpush1.msra.mxu0 %v204
    %360 = vmatprep.subr.mxu0 0.0
    %361 = vmatpush1.msra.mxu0 %v205
    %362 = vmatprep.subr.mxu0 0.0
    %363 = vmatpush1.msra.mxu0 %v206
    %364 = vmatprep.mubr.f32.mxu0 %v141
    %365 = vmatmul.mubr.f32.gmra.mrb[0].mxu0 %v140
    %v366 = vpop.f32.mrb[0].mxu0
    %v367 = vadd.f32 %v297, %v366
    %v368 = vpop.f32.mrb[0].mxu0
    %369 = vdwg.mxu0
    %370 = vmatprep.subr.mxu0 0.0
    %371 = vmatpush1.msra.mxu0 %v207
    %372 = vmatprep.subr.mxu0 0.0
    %373 = vmatpush1.msra.mxu0 %v208
    %374 = vmatprep.subr.mxu0 0.0
    %375 = vmatpush1.msra.mxu0 %v209
    %376 = vmatprep.subr.mxu0 0.0
    %377 = vmatpush1.msra.mxu0 %v210
    %378 = vmatprep.subr.mxu0 0.0
    %379 = vmatpush1.msra.mxu0 %v211
    %380 = vmatprep.subr.mxu0 0.0
    %381 = vmatpush1.msra.mxu0 %v212
    %382 = vmatprep.subr.mxu0 0.0
    %383 = vmatpush1.msra.mxu0 %v213
    %384 = vmatprep.subr.mxu0 0.0
    %385 = vmatpush1.msra.mxu0 %v214
    %386 = vmatprep.subr.mxu0 0.0
    %387 = vmatpush1.msra.mxu0 %v215
    %388 = vmatprep.subr.mxu0 0.0
    %389 = vmatpush1.msra.mxu0 %v216
    %390 = vmatprep.subr.mxu0 0.0
    %391 = vmatpush1.msra.mxu0 %v217
    %392 = vmatprep.subr.mxu0 0.0
    %393 = vmatpush1.msra.mxu0 %v218
    %394 = vmatprep.subr.mxu0 0.0
    %395 = vmatpush1.msra.mxu0 %v219
    %396 = vmatprep.subr.mxu0 0.0
    %397 = vmatpush1.msra.mxu0 %v220
    %398 = vmatprep.subr.mxu0 0.0
    %399 = vmatpush1.msra.mxu0 %v221
    %400 = vmatprep.subr.mxu0 0.0
    %401 = vmatpush1.msra.mxu0 %v222
    %402 = vmatprep.subr.mxu0 0.0
    %403 = vmatpush1.msra.mxu0 0.0
    %404 = vmatprep.subr.mxu0 0.0
    %405 = vmatpush1.msra.mxu0 0.0
    %406 = vmatprep.subr.mxu0 0.0
    %407 = vmatpush1.msra.mxu0 0.0
    %408 = vmatprep.subr.mxu0 0.0
    %409 = vmatpush1.msra.mxu0 0.0
    %410 = vmatprep.subr.mxu0 0.0
    %411 = vmatpush1.msra.mxu0 0.0
    %412 = vmatprep.subr.mxu0 0.0
    %413 = vmatpush1.msra.mxu0 0.0
    %414 = vmatprep.subr.mxu0 0.0
    %415 = vmatpush1.msra.mxu0 0.0
    %416 = vmatprep.subr.mxu0 0.0
    %417 = vmatpush1.msra.mxu0 0.0
    %418 = vmatprep.subr.mxu0 0.0
    %419 = vmatpush1.msra.mxu0 0.0
    %420 = vmatprep.subr.mxu0 0.0
    %421 = vmatpush1.msra.mxu0 0.0
    %422 = vmatprep.subr.mxu0 0.0
    %423 = vmatpush1.msra.mxu0 0.0
    %424 = vmatprep.subr.mxu0 0.0
    %425 = vmatpush1.msra.mxu0 0.0
    %426 = vmatprep.subr.mxu0 0.0
    %427 = vmatpush1.msra.mxu0 0.0
    %428 = vmatprep.subr.mxu0 0.0
    %429 = vmatpush1.msra.mxu0 0.0
    %430 = vmatprep.subr.mxu0 0.0
    %431 = vmatpush1.msra.mxu0 0.0
    %432 = vmatprep.subr.mxu0 0.0
    %433 = vmatpush1.msra.mxu0 0.0
    %434 = vmatprep.mubr.f32.mxu0 0.0
    %435 = vmatmul.mubr.f32.gmra.mrb[0].mxu0 %v142
    %v436 = vpop.f32.mrb[0].mxu0
    %v437 = vadd.f32 %v367, %v436
    %v438 = vpop.f32.mrb[0].mxu0
    %439 = vdwg.mxu0
    %v440 = vmax.f32 %v437, 0.0
    %v441 = vlaneseq
    %v442 = vshrl.u32 %v441, 7
    %s443 = smul.u32 0, 8
    %v444 = vstv %s443
    %v445 = vadd.s32 %v442, %v444
    %v446 = vmul.u32 %v445, 128
    %v447 = vadd.s32 %v446, %v64
    %v448 = vmul.u32 %v447, 2654435769
    %s449 = sld [smem:[#allocation3]]
    %v450 = vstv %s449
    %v451 = vadd.s32 %v448, %v450
    %v452 = vshrl.u32 %v451, 16
    %v453 = vxor.u32 %v451, %v452
    %v454 = vmul.u32 %v453, 2246822507
    %v455 = vshrl.u32 %v454, 13
    %v456 = vxor.u32 %v454, %v455
    %v457 = vmul.u32 %v456, 3266489909
    %v458 = vshrl.u32 %v457, 16
    %v459 = vxor.u32 %v457, %v458
    %v460 = vand.u32 %v459, 8388607
    %vm461 = vcmp.ge.u32.totalorder %v460, 2516582
    %v462 = vsel %vm461, 1.4285715, 0.0
    %v463 = vmul.f32 %v440, %v462
    %v464 = vld [vmem:[#allocation9] sm:$0xff]
    %v465 = vld [vmem:[#allocation9 + $0x8] sm:$0xff]
    %v466 = vld [vmem:[#allocation9 + $0x10] sm:$0xff]
    %v467 = vld [vmem:[#allocation9 + $0x18] sm:$0xff]
    %v468 = vld [vmem:[#allocation9 + $0x20] sm:$0xff]
    %v469 = vld [vmem:[#allocation9 + $0x28] sm:$0xff]
    %v470 = vld [vmem:[#allocation9 + $0x30] sm:$0xff]
    %v471 = vld [vmem:[#allocation9 + $0x38] sm:$0xff]
    %v472 = vld [vmem:[#allocation9 + $0x40] sm:$0xff]
    %v473 = vld [vmem:[#allocation9 + $0x48] sm:$0xff]
    %v474 = vld [vmem:[#allocation9 + $0x50] sm:$0xff]
    %v475 = vld [vmem:[#allocation9 + $0x58] sm:$0xff]
    %v476 = vld [vmem:[#allocation9 + $0x60] sm:$0xff]
    %v477 = vld [vmem:[#allocation9 + $0x68] sm:$0xff]
    %v478 = vld [vmem:[#allocation9 + $0x70] sm:$0xff]
    %v479 = vld [vmem:[#allocation9 + $0x78] sm:$0xff]
    %v480 = vld [vmem:[%s5] sm:$0x1]
    %v482 = vlaneseq
    %v483 = vshrl.u32 %v482, 7
    %v484 = vsub.s32 0, %v483
    %v485 = vrot.slane %v480, %v484
    %487 = vmatprep.subr.mxu0 0.0
    %488 = vmatpush1.msra.mxu0 %v464
    %489 = vmatprep.subr.mxu0 0.0
    %490 = vmatpush1.msra.mxu0 %v465
    %491 = vmatprep.subr.mxu0 0.0
    %492 = vmatpush1.msra.mxu0 %v466
    %493 = vmatprep.subr.mxu0 0.0
    %494 = vmatpush1.msra.mxu0 %v467
    %495 = vmatprep.subr.mxu0 0.0
    %496 = vmatpush1.msra.mxu0 %v468
    %497 = vmatprep.subr.mxu0 0.0
    %498 = vmatpush1.msra.mxu0 %v469
    %499 = vmatprep.subr.mxu0 0.0
    %500 = vmatpush1.msra.mxu0 %v470
    %501 = vmatprep.subr.mxu0 0.0
    %502 = vmatpush1.msra.mxu0 %v471
    %503 = vmatprep.subr.mxu0 0.0
    %504 = vmatpush1.msra.mxu0 %v472
    %505 = vmatprep.subr.mxu0 0.0
    %506 = vmatpush1.msra.mxu0 %v473
    %507 = vmatprep.subr.mxu0 0.0
    %508 = vmatpush1.msra.mxu0 %v474
    %509 = vmatprep.subr.mxu0 0.0
    %510 = vmatpush1.msra.mxu0 %v475
    %511 = vmatprep.subr.mxu0 0.0
    %512 = vmatpush1.msra.mxu0 %v476
    %513 = vmatprep.subr.mxu0 0.0
    %514 = vmatpush1.msra.mxu0 %v477
    %515 = vmatprep.subr.mxu0 0.0
    %516 = vmatpush1.msra.mxu0 %v478
    %517 = vmatprep.subr.mxu0 0.0
    %518 = vmatpush1.msra.mxu0 %v479
    %519 = vmatprep.subr.mxu0 0.0
    %520 = vmatpush1.msra.mxu0 0.0
    %521 = vmatprep.subr.mxu0 0.0
    %522 = vmatpush1.msra.mxu0 0.0
    %523 = vmatprep.subr.mxu0 0.0
    %524 = vmatpush1.msra.mxu0 0.0
    %525 = vmatprep.subr.mxu0 0.0
    %526 = vmatpush1.msra.mxu0 0.0
    %527 = vmatprep.subr.mxu0 0.0
    %528 = vmatpush1.msra.mxu0 0.0
    %529 = vmatprep.subr.mxu0 0.0
    %530 = vmatpush1.msra.mxu0 0.0
    %531 = vmatprep.subr.mxu0 0.0
    %532 = vmatpush1.msra.mxu0 0.0
    %533 = vmatprep.subr.mxu0 0.0
    %534 = vmatpush1.msra.mxu0 0.0
    %535 = vmatprep.subr.mxu0 0.0
    %536 = vmatpush1.msra.mxu0 0.0
    %537 = vmatprep.subr.mxu0 0.0
    %538 = vmatpush1.msra.mxu0 0.0
    %539 = vmatprep.subr.mxu0 0.0
    %540 = vmatpush1.msra.mxu0 0.0
    %541 = vmatprep.subr.mxu0 0.0
    %542 = vmatpush1.msra.mxu0 0.0
    %543 = vmatprep.subr.mxu0 0.0
    %544 = vmatpush1.msra.mxu0 0.0
    %545 = vmatprep.subr.mxu0 0.0
    %546 = vmatpush1.msra.mxu0 0.0
    %547 = vmatprep.subr.mxu0 0.0
    %548 = vmatpush1.msra.mxu0 0.0
    %549 = vmatprep.subr.mxu0 0.0
    %550 = vmatpush1.msra.mxu0 0.0
    %551 = vmatprep.mubr.f32.mxu0 0.0
    %552 = vmatmul.mubr.f32.gmra.mrb[0].mxu0 %v463
    %v553 = vpop.f32.mrb[0].mxu0
    %v554 = vadd.f32 %v485, %v553
    %v555 = vpop.f32.mrb[0].mxu0
    %556 = vdwg.mxu0
    %557 = vmax.xlane.f32.xlu0 %v554
    %v558 = vpop.xlane.xlu0 %557
    %v559 = vsub.f32 %v554, %v558
    %v560 = vmul.f32 %v559, 1.442695
    %v561 = vpow.pop %v560
    %562 = vadd.xlane.f32.xlu0 %v561
    %v563 = vpop.xlane.xlu0 %562
    %v564 = vlog2.pop %v563
    %v565 = vmul.f32 %v564, 0.6931472
    %v566 = vsub.f32 %v559, %v565
    %567 = vst [vmem:[#allocation10] sm:$0xff] %v566
    // Predicated region
    $region34: #{tpu_custom_call.1} parent=1 // pred_check
      _
    $region35: #{tpu_custom_call.1} parent=1 // pred_check_branch
      %569 = sbr.rel (0) target = $region37
    $region36: #{tpu_custom_call.1} parent=1 // pred_region
      %s571 = ssub.s32 128, 128
      %572 = vsyncadd [#allocation6], %s571
      %s574 = sshll.u32 [#allocation10], 4
      %s575 = int_to_ptr.vmem [resolvable:$true] %s574
      %577 = dma.vmem_to_hbm [thread:$0]  %s575, 128, %s6, [#allocation6]
    $region37: #{tpu_custom_call.1} parent=1 // pred_fallthru
      _
    // Predicated region
    $region38: #{tpu_custom_call.1} parent=1 // pred_check
      _
    $region39: #{tpu_custom_call.1} parent=1 // pred_check_branch
      %579 = sbr.rel (0) target = $region41
    $region40: #{tpu_custom_call.1} parent=1 // pred_region
      %580 = dma.done [#allocation6], 128
    $region41: #{tpu_custom_call.1} parent=1 // pred_fallthru
      _
    %581 = vsyncpa [#allocation5], 1
    %582 = vsyncpa [#allocation8], 1
    %583 = vsyncpa [#allocation6], 1

</llo_original>
